<compile_context>
chip_gen: v7x
topology: tpu7x:2x2x1
jax: 0.10.0
libtpu: 0.0.40
codegen_flags: <defaults>
</compile_context>

<pallas_src>
import jax
import jax.numpy as jnp
import numpy as np
from jax.experimental import pallas as pl
from jax.experimental.pallas import tpu as pltpu


# ~7 concurrently-live full-tile f32 temporaries inside the kernel body
# (t, s casts, e_t, e_s, centered/product transients).
_TEMP_F32_BYTES_PER_ELEM = 28


def _round_up(x, m):
    return ((x + m - 1) // m) * m


def _tpu_vmem_capacity_bytes():
    try:
        cap = int(pltpu.get_tpu_info().vmem_capacity_bytes)
        if cap > 0:
            return cap
    except Exception:
        pass
    return 64 * 1024 * 1024  # conservative fallback (v7x-sized)


def _tpu_num_tensorcores():
    try:
        info = pltpu.get_tpu_info()
        for name in ("num_cores", "tensor_cores_per_chip", "num_tensorcores",
                     "cores_per_chip"):
            v = getattr(info, name, None)
            if v:
                return max(1, int(v))
    except Exception:
        pass
    try:
        return max(1, int(getattr(jax.devices()[0], "num_cores", 1)))
    except Exception:
        return 1


def _fak_partial_kernel(t_ref, s_ref, batch_ref, scalar_ref,
                        dot_acc, tsq_acc, ssq_acc, kl_acc, dm_acc, dv_acc):
    """One (N, c_blk, HW) tile -> partial FAK statistics (into VMEM scratch)."""
    ki = pl.program_id(1)

    @pl.when(ki == 0)
    def _init():
        dot_acc[...] = jnp.zeros_like(dot_acc)
        tsq_acc[...] = jnp.zeros_like(tsq_acc)
        ssq_acc[...] = jnp.zeros_like(ssq_acc)
        kl_acc[...] = jnp.zeros_like(kl_acc)
        dm_acc[...] = jnp.zeros_like(dm_acc)
        dv_acc[...] = jnp.zeros_like(dv_acc)

    # Cast in-kernel: inputs stay narrow (e.g. bf16) in HBM, math is f32.
    t = t_ref[...].astype(jnp.float32)
    s = s_ref[...].astype(jnp.float32)
    n, _, hw = t.shape
    inv_hw = jnp.float32(1.0 / hw)

    # ---- row (lane) reductions shared by cosine / gaussian terms ------------
    ts_row = jnp.sum(t * s, axis=-1)                     # (N, Cb)
    tt_row = jnp.sum(t * t, axis=-1)                     # (N, Cb)
    ss_row = jnp.sum(s * s, axis=-1)                     # (N, Cb)
    t_mean = jnp.sum(t, axis=-1, keepdims=True) * inv_hw  # (N, Cb, 1)
    s_mean = jnp.sum(s, axis=-1, keepdims=True) * inv_hw

    # ---- cosine-similarity partials (per batch element) ---------------------
    dot_acc[...] += jnp.sum(ts_row, axis=-1, keepdims=True)   # (N, 1)
    tsq_acc[...] += jnp.sum(tt_row, axis=-1, keepdims=True)
    ssq_acc[...] += jnp.sum(ss_row, axis=-1, keepdims=True)

    # ---- KL(teacher || student), spatial log-softmax, no log_ratio tile -----
    # sum_j p_t*(logp_t - logp_s) = (1/sum_t) * sum_j e_t*(t-s) - corr
    t_max = jnp.max(t, axis=-1, keepdims=True)
    s_max = jnp.max(s, axis=-1, keepdims=True)
    e_t = jnp.exp(t - t_max)                              # one EUP pass each
    e_s = jnp.exp(s - s_max)
    sum_t = jnp.sum(e_t, axis=-1, keepdims=True)          # (N, Cb, 1)
    sum_s = jnp.sum(e_s, axis=-1, keepdims=True)
    corr = (t_max - s_max) + (jnp.log(sum_t) - jnp.log(sum_s))
    kl_row = (jnp.sum(e_t * (t - s), axis=-1, keepdims=True)
              * pl.reciprocal(sum_t) - corr)
    kl_acc[...] += jnp.sum(kl_row)

    # ---- Gaussian-loss partials: two-pass mean / biased variance ------------
    t_var = jnp.sum((t - t_mean) ** 2, axis=-1, keepdims=True) * inv_hw
    s_var = jnp.sum((s - s_mean) ** 2, axis=-1, keepdims=True) * inv_hw
    dm = t_mean - s_mean
    dv = t_var - s_var                                    # (+eps on both cancels)
    dm_acc[...] += jnp.sum(dm * dm)
    dv_acc[...] += jnp.sum(dv * dv)

    # ---- emit the tiny output blocks once, at the last K step ---------------
    @pl.when(ki == pl.num_programs(1) - 1)
    def _finalize():
        zero = jnp.float32(0.0)
        col_n = jax.lax.broadcasted_iota(jnp.int32, (n, 4), 1)
        batch_ref[0] = (jnp.where(col_n == 0, dot_acc[...], zero)
                        + jnp.where(col_n == 1, tsq_acc[...], zero)
                        + jnp.where(col_n == 2, ssq_acc[...], zero))
        col_1 = jax.lax.broadcasted_iota(jnp.int32, (1, 4), 1)
        scalar_ref[0] = (jnp.where(col_1 == 0, kl_acc[...], zero)
                         + jnp.where(col_1 == 1, dm_acc[...], zero)
                         + jnp.where(col_1 == 2, dv_acc[...], zero))


def _layer_stats(t_nchw, s_nchw, *, epsilon=1e-8, vmem_budget_bytes=None,
                 num_parallel=None):
    """Per-layer (mean cosine similarity, kl_loss + gaussian_loss)."""
    n, c, h, w = t_nchw.shape
    hw = h * w
    t3 = t_nchw.reshape(n, c, hw)   # keep original dtype; cast happens in-kernel
    s3 = s_nchw.reshape(n, c, hw)

    # ---- generation-aware VMEM budget / limit --------------------------------
    cap = _tpu_vmem_capacity_bytes()
    if vmem_budget_bytes is None:
        vmem_budget_bytes = int(cap * 0.6)     # streamed buffers + f32 temps
    vmem_limit_bytes = max(int(cap * 0.75), 32 * 1024 * 1024)
    if num_parallel is None:
        num_parallel = _tpu_num_tensorcores()  # 1 on v5e/v6e, 2 on v7x

    # ---- tile sizing: inputs (2 tensors x 2 pipeline buffers, HBM dtype)
    #      plus the in-kernel f32 temporaries must fit the budget -------------
    itemsize = max(jnp.dtype(t3.dtype).itemsize, jnp.dtype(s3.dtype).itemsize)
    per_channel_bytes = n * hw * (4 * itemsize + _TEMP_F32_BYTES_PER_ELEM)
    max_cb = max(1, vmem_budget_bytes // per_channel_bytes)

    sub = max(8, 32 // itemsize)     # dtype-aware sublane-packing granularity
    want_split = num_parallel > 1 and c >= 2 * num_parallel * sub

    if c <= max_cb and not want_split:
        # whole channel axis in one resident block (block dim == full array dim
        # so the (8,128) divisibility rule does not apply).
        c_blk, c_pad, n_chunks = c, c, 1
    else:
        # channel-tiled path: multiple-of-`sub` chunks; zero-padded channels
        # contribute exactly 0 to every accumulated statistic.
        c_blk = max(sub, (min(max_cb, c) // sub) * sub)
        if want_split:
            # don't make chunks larger than one TensorCore's share
            c_blk = min(c_blk, _round_up(pl.cdiv(c, num_parallel), sub))
        c_pad = _round_up(c, c_blk)
        n_chunks = c_pad // c_blk
        if num_parallel > 1 and n_chunks % num_parallel != 0:
            want_chunks = _round_up(n_chunks, num_parallel)
            extra_c = (want_chunks - n_chunks) * c_blk
            if extra_c * 4 <= c:     # only pay a modest (<=25%) zero-pad overhead
                n_chunks, c_pad = want_chunks, want_chunks * c_blk

    if c_pad != c:
        pad_cfg = ((0, 0), (0, c_pad - c), (0, 0))
        t3 = jnp.pad(t3, pad_cfg)
        s3 = jnp.pad(s3, pad_cfg)

    p = num_parallel if (num_parallel > 1 and n_chunks % num_parallel == 0) else 1
    k_count = n_chunks // p

    in_map = lambda pi, ki: (0, pi * k_count + ki, 0)

    batch_parts, scalar_parts = pl.pallas_call(
        _fak_partial_kernel,
        out_shape=(jax.ShapeDtypeStruct((p, n, 4), jnp.float32),
                   jax.ShapeDtypeStruct((p, 1, 4), jnp.float32)),
        grid=(p, k_count),
        in_specs=[
            pl.BlockSpec((n, c_blk, hw), in_map),
            pl.BlockSpec((n, c_blk, hw), in_map),
        ],
        out_specs=(
            pl.BlockSpec((1, n, 4), lambda pi, ki: (pi, 0, 0)),
            pl.BlockSpec((1, 1, 4), lambda pi, ki: (pi, 0, 0)),
        ),
        scratch_shapes=[
            pltpu.VMEM((n, 1), jnp.float32),   # dot   accumulator
            pltpu.VMEM((n, 1), jnp.float32),   # |t|^2 accumulator
            pltpu.VMEM((n, 1), jnp.float32),   # |s|^2 accumulator
            pltpu.VMEM((1, 1), jnp.float32),   # KL    accumulator
            pltpu.VMEM((1, 1), jnp.float32),   # dmean^2 accumulator
            pltpu.VMEM((1, 1), jnp.float32),   # dvar^2  accumulator
        ],
        compiler_params=pltpu.CompilerParams(
            dimension_semantics=("parallel", "arbitrary"),
            vmem_limit_bytes=vmem_limit_bytes,
        ),
    )(t3, s3)

    # ---- tiny finalization in plain JAX (combines the parallel partials) ----
    batch = jnp.sum(batch_parts, axis=0)           # (N, 4)
    scal = jnp.sum(scalar_parts, axis=(0, 1))      # (4,)
    dot, tsq, ssq = batch[:, 0], batch[:, 1], batch[:, 2]
    # torch cosine_similarity clamps the *product* of norms at eps
    cos = dot / jnp.sqrt(jnp.maximum(tsq * ssq, epsilon * epsilon))
    cos_mean = jnp.mean(cos)
    kl = scal[0] / n                               # reduction='batchmean'
    gauss = (scal[1] + scal[2]) / (n * c)          # MSE over (N, C, 1, 1)
    return cos_mean, kl + gauss


def fak_loss(teacher_feats, student_feats, *, epsilon=1e-8,
             vmem_budget_bytes=None, num_parallel=None):
    """Pallas implementation of FAK.forward (output_size is unused upstream)."""
    cos_list, loss_list = [], []
    for t, s in zip(teacher_feats, student_feats):
        cos_mean, layer_loss = _layer_stats(
            t, s, epsilon=epsilon, vmem_budget_bytes=vmem_budget_bytes,
            num_parallel=num_parallel)
        cos_list.append(cos_mean)
        loss_list.append(layer_loss)
    attn = jax.nn.softmax(jnp.stack(cos_list), axis=0)   # glue: tiny (L,) softmax
    return jnp.sum(attn * jnp.stack(loss_list))


# ----------------------------- pure-JAX reference ---------------------------
def _fak_loss_ref(teacher_feats, student_feats, epsilon=1e-8):
    cos_list, per_layer = [], []
    for t, s in zip(teacher_feats, student_feats):
        n, c, h, w = t.shape
        tf = t.reshape(n, -1).astype(jnp.float32)
        sf = s.reshape(n, -1).astype(jnp.float32)
        w12 = jnp.sum(tf * sf, -1)
        w1 = jnp.sum(tf * tf, -1)
        w2 = jnp.sum(sf * sf, -1)
        cos = w12 / jnp.sqrt(jnp.maximum(w1 * w2, epsilon * epsilon))
        cos_list.append(jnp.mean(cos))
        t_log = jax.nn.log_softmax(t.reshape(n, c, -1).astype(jnp.float32), axis=-1)
        s_log = jax.nn.log_softmax(s.reshape(n, c, -1).astype(jnp.float32), axis=-1)
        kl = jnp.sum(jnp.exp(t_log) * (t_log - s_log)) / n
        t_mean = jnp.mean(t.astype(jnp.float32), axis=(2, 3))
        s_mean = jnp.mean(s.astype(jnp.float32), axis=(2, 3))
        t_var = jnp.var(t.astype(jnp.float32), axis=(2, 3))
        s_var = jnp.var(s.astype(jnp.float32), axis=(2, 3))
        gauss = jnp.mean((t_mean - s_mean) ** 2) + jnp.mean((t_var - s_var) ** 2)
        per_layer.append(kl + gauss)
    attn = jax.nn.softmax(jnp.stack(cos_list), axis=0)
    return jnp.sum(attn * jnp.stack(per_layer))


if __name__ == "__main__":
    key = jax.random.PRNGKey(0)
    # small NCHW feature maps consistent with the module
    layer_shapes = [(2, 4, 16, 16), (2, 8, 8, 8), (2, 32, 16, 16)]
    teacher_feats, student_feats = [], []
    for shp in layer_shapes:
        key, k1, k2 = jax.random.split(key, 3)
        teacher_feats.append(jax.random.normal(k1, shp, dtype=jnp.float32))
        student_feats.append(jax.random.normal(k2, shp, dtype=jnp.float32))

    ref = jax.block_until_ready(_fak_loss_ref(teacher_feats, student_feats))

    # default path: generation-aware budget (each small layer fits one block)
    loss = jax.block_until_ready(fak_loss(teacher_feats, student_feats))
    np.testing.assert_allclose(np.asarray(loss), np.asarray(ref),
                               rtol=1e-4, atol=1e-5)

    # force the channel-tiled (+ zero-pad) path with a tiny artificial budget
    # (c_blk=8 on the C=32 layer -> accumulation across the "arbitrary" axis;
    #  the C=4 layer exercises the zero-padded-channel fallback)
    loss_tiled = jax.block_until_ready(
        fak_loss(teacher_feats, student_feats, vmem_budget_bytes=64 * 1024))
    np.testing.assert_allclose(np.asarray(loss_tiled), np.asarray(ref),
                               rtol=1e-4, atol=1e-5)

    # same tiny budget but explicitly requesting a 2-way "parallel" split
    # (exercises the v7x megacore-style grid even on 1-TC chips)
    loss_par = jax.block_until_ready(
        fak_loss(teacher_feats, student_feats, vmem_budget_bytes=64 * 1024,
                 num_parallel=2))
    np.testing.assert_allclose(np.asarray(loss_par), np.asarray(ref),
                               rtol=1e-4, atol=1e-5)

    print("KERNEL_OK")
</pallas_src>

<mosaic_0001>
module attributes {stable_mosaic.version = 11 : i64} {
  func.func @_fak_partial_kernel(%arg0: i32, %arg1: i32, %arg2: memref<2x4x256xf32, #tpu.memory_space<vmem>>, %arg3: memref<2x4x256xf32, #tpu.memory_space<vmem>>, %arg4: memref<1x2x4xf32, #tpu.memory_space<vmem>>, %arg5: memref<1x1x4xf32, #tpu.memory_space<vmem>>, %arg6: memref<2x1xf32, #tpu.memory_space<vmem>>, %arg7: memref<2x1xf32, #tpu.memory_space<vmem>>, %arg8: memref<2x1xf32, #tpu.memory_space<vmem>>, %arg9: memref<1x1xf32, #tpu.memory_space<vmem>>, %arg10: memref<1x1xf32, #tpu.memory_space<vmem>>, %arg11: memref<1x1xf32, #tpu.memory_space<vmem>>) attributes {dimension_semantics = [#tpu.dimension_semantics<parallel>, #tpu.dimension_semantics<arbitrary>], iteration_bounds = array<i64: 1, 1>, scalar_prefetch = 0 : i64, scratch_operands = 6 : i64, tpu.core_type = #tpu.core_type<tc>, window_params = [{transform_indices = @transform_0, window_bounds = array<i64: 2, 4, 256>}, {transform_indices = @transform_1, window_bounds = array<i64: 2, 4, 256>}, {transform_indices = @transform_2, window_bounds = array<i64: 1, 2, 4>}, {transform_indices = @transform_3, window_bounds = array<i64: 1, 1, 4>}]} {
    %c0_i32 = arith.constant 0 : i32
    %0 = arith.cmpi eq, %arg1, %c0_i32 : i32
    %1 = arith.extui %0 : i1 to i32
    %c0_i32_0 = arith.constant 0 : i32
    %2 = arith.cmpi ne, %1, %c0_i32_0 : i32
    scf.if %2 {
      %cst_53 = arith.constant 0.000000e+00 : f32
      %105 = vector.broadcast %cst_53 : f32 to vector<2x1xf32>
      %c0_54 = arith.constant 0 : index
      %c0_55 = arith.constant 0 : index
      %106 = vector.load %arg6[%c0_54, %c0_55] : memref<2x1xf32, #tpu.memory_space<vmem>>, vector<2x1xf32>
      tpu.vector_store %arg6[%c0_54, %c0_55], %105 {strides = array<i32>} : memref<2x1xf32, #tpu.memory_space<vmem>>, vector<2x1xf32>,
      %cst_56 = arith.constant 0.000000e+00 : f32
      %107 = vector.broadcast %cst_56 : f32 to vector<2x1xf32>
      %c0_57 = arith.constant 0 : index
      %c0_58 = arith.constant 0 : index
      %108 = vector.load %arg7[%c0_57, %c0_58] : memref<2x1xf32, #tpu.memory_space<vmem>>, vector<2x1xf32>
      tpu.vector_store %arg7[%c0_57, %c0_58], %107 {strides = array<i32>} : memref<2x1xf32, #tpu.memory_space<vmem>>, vector<2x1xf32>,
      %cst_59 = arith.constant 0.000000e+00 : f32
      %109 = vector.broadcast %cst_59 : f32 to vector<2x1xf32>
      %c0_60 = arith.constant 0 : index
      %c0_61 = arith.constant 0 : index
      %110 = vector.load %arg8[%c0_60, %c0_61] : memref<2x1xf32, #tpu.memory_space<vmem>>, vector<2x1xf32>
      tpu.vector_store %arg8[%c0_60, %c0_61], %109 {strides = array<i32>} : memref<2x1xf32, #tpu.memory_space<vmem>>, vector<2x1xf32>,
      %cst_62 = arith.constant 0.000000e+00 : f32
      %111 = vector.broadcast %cst_62 : f32 to vector<1x1xf32>
      %c0_63 = arith.constant 0 : index
      %c0_64 = arith.constant 0 : index
      %112 = vector.load %arg9[%c0_63, %c0_64] : memref<1x1xf32, #tpu.memory_space<vmem>>, vector<1x1xf32>
      tpu.vector_store %arg9[%c0_63, %c0_64], %111 {strides = array<i32>} : memref<1x1xf32, #tpu.memory_space<vmem>>, vector<1x1xf32>,
      %cst_65 = arith.constant 0.000000e+00 : f32
      %113 = vector.broadcast %cst_65 : f32 to vector<1x1xf32>
      %c0_66 = arith.constant 0 : index
      %c0_67 = arith.constant 0 : index
      %114 = vector.load %arg10[%c0_66, %c0_67] : memref<1x1xf32, #tpu.memory_space<vmem>>, vector<1x1xf32>
      tpu.vector_store %arg10[%c0_66, %c0_67], %113 {strides = array<i32>} : memref<1x1xf32, #tpu.memory_space<vmem>>, vector<1x1xf32>,
      %cst_68 = arith.constant 0.000000e+00 : f32
      %115 = vector.broadcast %cst_68 : f32 to vector<1x1xf32>
      %c0_69 = arith.constant 0 : index
      %c0_70 = arith.constant 0 : index
      %116 = vector.load %arg11[%c0_69, %c0_70] : memref<1x1xf32, #tpu.memory_space<vmem>>, vector<1x1xf32>
      tpu.vector_store %arg11[%c0_69, %c0_70], %115 {strides = array<i32>} : memref<1x1xf32, #tpu.memory_space<vmem>>, vector<1x1xf32>,
    } else {
    }
    %c0 = arith.constant 0 : index
    %c0_1 = arith.constant 0 : index
    %c0_2 = arith.constant 0 : index
    %3 = vector.load %arg2[%c0, %c0_1, %c0_2] : memref<2x4x256xf32, #tpu.memory_space<vmem>>, vector<2x4x256xf32>
    %c0_3 = arith.constant 0 : index
    %c0_4 = arith.constant 0 : index
    %c0_5 = arith.constant 0 : index
    %4 = vector.load %arg3[%c0_3, %c0_4, %c0_5] : memref<2x4x256xf32, #tpu.memory_space<vmem>>, vector<2x4x256xf32>
    %5 = arith.mulf %3, %4 : vector<2x4x256xf32>
    %cst = arith.constant dense<0.000000e+00> : vector<2x4xf32>
    %6 = vector.multi_reduction <add>, %5, %cst [2] : vector<2x4x256xf32> to vector<2x4xf32>
    %7 = arith.mulf %3, %3 : vector<2x4x256xf32>
    %cst_6 = arith.constant dense<0.000000e+00> : vector<2x4xf32>
    %8 = vector.multi_reduction <add>, %7, %cst_6 [2] : vector<2x4x256xf32> to vector<2x4xf32>
    %9 = arith.mulf %4, %4 : vector<2x4x256xf32>
    %cst_7 = arith.constant dense<0.000000e+00> : vector<2x4xf32>
    %10 = vector.multi_reduction <add>, %9, %cst_7 [2] : vector<2x4x256xf32> to vector<2x4xf32>
    %cst_8 = arith.constant dense<0.000000e+00> : vector<2x4xf32>
    %11 = vector.multi_reduction <add>, %3, %cst_8 [2] : vector<2x4x256xf32> to vector<2x4xf32>
    %12 = vector.shape_cast %11 : vector<2x4xf32> to vector<2x4x1xf32>
    %cst_9 = arith.constant 3.906250e-03 : f32
    %13 = vector.broadcast %cst_9 : f32 to vector<2x4x1xf32>
    %14 = arith.mulf %12, %13 : vector<2x4x1xf32>
    %cst_10 = arith.constant dense<0.000000e+00> : vector<2x4xf32>
    %15 = vector.multi_reduction <add>, %4, %cst_10 [2] : vector<2x4x256xf32> to vector<2x4xf32>
    %16 = vector.shape_cast %15 : vector<2x4xf32> to vector<2x4x1xf32>
    %cst_11 = arith.constant 3.906250e-03 : f32
    %17 = vector.broadcast %cst_11 : f32 to vector<2x4x1xf32>
    %18 = arith.mulf %16, %17 : vector<2x4x1xf32>
    %c0_12 = arith.constant 0 : index
    %c0_13 = arith.constant 0 : index
    %19 = vector.load %arg6[%c0_12, %c0_13] : memref<2x1xf32, #tpu.memory_space<vmem>>, vector<2x1xf32>
    %cst_14 = arith.constant dense<0.000000e+00> : vector<2xf32>
    %20 = vector.multi_reduction <add>, %6, %cst_14 [1] : vector<2x4xf32> to vector<2xf32>
    %21 = vector.shape_cast %20 : vector<2xf32> to vector<2x1xf32>
    %22 = arith.addf %19, %21 : vector<2x1xf32>
    %c0_15 = arith.constant 0 : index
    %c0_16 = arith.constant 0 : index
    %23 = vector.load %arg6[%c0_15, %c0_16] : memref<2x1xf32, #tpu.memory_space<vmem>>, vector<2x1xf32>
    tpu.vector_store %arg6[%c0_15, %c0_16], %22 {strides = array<i32>} : memref<2x1xf32, #tpu.memory_space<vmem>>, vector<2x1xf32>,
    %c0_17 = arith.constant 0 : index
    %c0_18 = arith.constant 0 : index
    %24 = vector.load %arg7[%c0_17, %c0_18] : memref<2x1xf32, #tpu.memory_space<vmem>>, vector<2x1xf32>
    %cst_19 = arith.constant dense<0.000000e+00> : vector<2xf32>
    %25 = vector.multi_reduction <add>, %8, %cst_19 [1] : vector<2x4xf32> to vector<2xf32>
    %26 = vector.shape_cast %25 : vector<2xf32> to vector<2x1xf32>
    %27 = arith.addf %24, %26 : vector<2x1xf32>
    %c0_20 = arith.constant 0 : index
    %c0_21 = arith.constant 0 : index
    %28 = vector.load %arg7[%c0_20, %c0_21] : memref<2x1xf32, #tpu.memory_space<vmem>>, vector<2x1xf32>
    tpu.vector_store %arg7[%c0_20, %c0_21], %27 {strides = array<i32>} : memref<2x1xf32, #tpu.memory_space<vmem>>, vector<2x1xf32>,
    %c0_22 = arith.constant 0 : index
    %c0_23 = arith.constant 0 : index
    %29 = vector.load %arg8[%c0_22, %c0_23] : memref<2x1xf32, #tpu.memory_space<vmem>>, vector<2x1xf32>
    %cst_24 = arith.constant dense<0.000000e+00> : vector<2xf32>
    %30 = vector.multi_reduction <add>, %10, %cst_24 [1] : vector<2x4xf32> to vector<2xf32>
    %31 = vector.shape_cast %30 : vector<2xf32> to vector<2x1xf32>
    %32 = arith.addf %29, %31 : vector<2x1xf32>
    %c0_25 = arith.constant 0 : index
    %c0_26 = arith.constant 0 : index
    %33 = vector.load %arg8[%c0_25, %c0_26] : memref<2x1xf32, #tpu.memory_space<vmem>>, vector<2x1xf32>
    tpu.vector_store %arg8[%c0_25, %c0_26], %32 {strides = array<i32>} : memref<2x1xf32, #tpu.memory_space<vmem>>, vector<2x1xf32>,
    %cst_27 = arith.constant dense<0xFF800000> : vector<2x4xf32>
    %34 = vector.multi_reduction <maximumf>, %3, %cst_27 [2] : vector<2x4x256xf32> to vector<2x4xf32>
    %35 = vector.shape_cast %34 : vector<2x4xf32> to vector<2x4x1xf32>
    %cst_28 = arith.constant dense<0xFF800000> : vector<2x4xf32>
    %36 = vector.multi_reduction <maximumf>, %4, %cst_28 [2] : vector<2x4x256xf32> to vector<2x4xf32>
    %37 = vector.shape_cast %36 : vector<2x4xf32> to vector<2x4x1xf32>
    %38 = vector.broadcast %35 : vector<2x4x1xf32> to vector<2x4x256xf32>
    %39 = arith.subf %3, %38 : vector<2x4x256xf32>
    %40 = math.exp %39 : vector<2x4x256xf32>
    %41 = vector.broadcast %37 : vector<2x4x1xf32> to vector<2x4x256xf32>
    %42 = arith.subf %4, %41 : vector<2x4x256xf32>
    %43 = math.exp %42 : vector<2x4x256xf32>
    %cst_29 = arith.constant dense<0.000000e+00> : vector<2x4xf32>
    %44 = vector.multi_reduction <add>, %40, %cst_29 [2] : vector<2x4x256xf32> to vector<2x4xf32>
    %45 = vector.shape_cast %44 : vector<2x4xf32> to vector<2x4x1xf32>
    %cst_30 = arith.constant dense<0.000000e+00> : vector<2x4xf32>
    %46 = vector.multi_reduction <add>, %43, %cst_30 [2] : vector<2x4x256xf32> to vector<2x4xf32>
    %47 = vector.shape_cast %46 : vector<2x4xf32> to vector<2x4x1xf32>
    %48 = arith.subf %35, %37 : vector<2x4x1xf32>
    %49 = math.log %45 : vector<2x4x1xf32>
    %50 = math.log %47 : vector<2x4x1xf32>
    %51 = arith.subf %49, %50 : vector<2x4x1xf32>
    %52 = arith.addf %48, %51 : vector<2x4x1xf32>
    %53 = arith.subf %3, %4 : vector<2x4x256xf32>
    %54 = arith.mulf %40, %53 : vector<2x4x256xf32>
    %cst_31 = arith.constant dense<0.000000e+00> : vector<2x4xf32>
    %55 = vector.multi_reduction <add>, %54, %cst_31 [2] : vector<2x4x256xf32> to vector<2x4xf32>
    %56 = vector.shape_cast %55 : vector<2x4xf32> to vector<2x4x1xf32>
    %57 = tpu.reciprocal %45 : vector<2x4x1xf32> -> vector<2x4x1xf32>
    %58 = arith.mulf %56, %57 : vector<2x4x1xf32>
    %59 = arith.subf %58, %52 : vector<2x4x1xf32>
    %c0_32 = arith.constant 0 : index
    %c0_33 = arith.constant 0 : index
    %60 = vector.load %arg9[%c0_32, %c0_33] : memref<1x1xf32, #tpu.memory_space<vmem>>, vector<1x1xf32>
    %61 = vector.shape_cast %59 : vector<2x4x1xf32> to vector<1x2x4x1xf32>
    %cst_34 = arith.constant dense<0.000000e+00> : vector<1xf32>
    %62 = vector.multi_reduction <add>, %61, %cst_34 [1, 2, 3] : vector<1x2x4x1xf32> to vector<1xf32>
    %63 = vector.shape_cast %62 : vector<1xf32> to vector<1x1x1x1xf32>
    %64 = vector.extract %63[0, 0, 0, 0] : f32 from vector<1x1x1x1xf32>
    %65 = vector.broadcast %64 : f32 to vector<1x1xf32>
    %66 = arith.addf %60, %65 : vector<1x1xf32>
    %c0_35 = arith.constant 0 : index
    %c0_36 = arith.constant 0 : index
    %67 = vector.load %arg9[%c0_35, %c0_36] : memref<1x1xf32, #tpu.memory_space<vmem>>, vector<1x1xf32>
    tpu.vector_store %arg9[%c0_35, %c0_36], %66 {strides = array<i32>} : memref<1x1xf32, #tpu.memory_space<vmem>>, vector<1x1xf32>,
    %68 = vector.broadcast %14 : vector<2x4x1xf32> to vector<2x4x256xf32>
    %69 = arith.subf %3, %68 : vector<2x4x256xf32>
    %70 = arith.mulf %69, %69 : vector<2x4x256xf32>
    %cst_37 = arith.constant dense<0.000000e+00> : vector<2x4xf32>
    %71 = vector.multi_reduction <add>, %70, %cst_37 [2] : vector<2x4x256xf32> to vector<2x4xf32>
    %72 = vector.shape_cast %71 : vector<2x4xf32> to vector<2x4x1xf32>
    %cst_38 = arith.constant 3.906250e-03 : f32
    %73 = vector.broadcast %cst_38 : f32 to vector<2x4x1xf32>
    %74 = arith.mulf %72, %73 : vector<2x4x1xf32>
    %75 = vector.broadcast %18 : vector<2x4x1xf32> to vector<2x4x256xf32>
    %76 = arith.subf %4, %75 : vector<2x4x256xf32>
    %77 = arith.mulf %76, %76 : vector<2x4x256xf32>
    %cst_39 = arith.constant dense<0.000000e+00> : vector<2x4xf32>
    %78 = vector.multi_reduction <add>, %77, %cst_39 [2] : vector<2x4x256xf32> to vector<2x4xf32>
    %79 = vector.shape_cast %78 : vector<2x4xf32> to vector<2x4x1xf32>
    %cst_40 = arith.constant 3.906250e-03 : f32
    %80 = vector.broadcast %cst_40 : f32 to vector<2x4x1xf32>
    %81 = arith.mulf %79, %80 : vector<2x4x1xf32>
    %82 = arith.subf %14, %18 : vector<2x4x1xf32>
    %83 = arith.subf %74, %81 : vector<2x4x1xf32>
    %c0_41 = arith.constant 0 : index
    %c0_42 = arith.constant 0 : index
    %84 = vector.load %arg10[%c0_41, %c0_42] : memref<1x1xf32, #tpu.memory_space<vmem>>, vector<1x1xf32>
    %85 = arith.mulf %82, %82 : vector<2x4x1xf32>
    %86 = vector.shape_cast %85 : vector<2x4x1xf32> to vector<1x2x4x1xf32>
    %cst_43 = arith.constant dense<0.000000e+00> : vector<1xf32>
    %87 = vector.multi_reduction <add>, %86, %cst_43 [1, 2, 3] : vector<1x2x4x1xf32> to vector<1xf32>
    %88 = vector.shape_cast %87 : vector<1xf32> to vector<1x1x1x1xf32>
    %89 = vector.extract %88[0, 0, 0, 0] : f32 from vector<1x1x1x1xf32>
    %90 = vector.broadcast %89 : f32 to vector<1x1xf32>
    %91 = arith.addf %84, %90 : vector<1x1xf32>
    %c0_44 = arith.constant 0 : index
    %c0_45 = arith.constant 0 : index
    %92 = vector.load %arg10[%c0_44, %c0_45] : memref<1x1xf32, #tpu.memory_space<vmem>>, vector<1x1xf32>
    tpu.vector_store %arg10[%c0_44, %c0_45], %91 {strides = array<i32>} : memref<1x1xf32, #tpu.memory_space<vmem>>, vector<1x1xf32>,
    %c0_46 = arith.constant 0 : index
    %c0_47 = arith.constant 0 : index
    %93 = vector.load %arg11[%c0_46, %c0_47] : memref<1x1xf32, #tpu.memory_space<vmem>>, vector<1x1xf32>
    %94 = arith.mulf %83, %83 : vector<2x4x1xf32>
    %95 = vector.shape_cast %94 : vector<2x4x1xf32> to vector<1x2x4x1xf32>
    %cst_48 = arith.constant dense<0.000000e+00> : vector<1xf32>
    %96 = vector.multi_reduction <add>, %95, %cst_48 [1, 2, 3] : vector<1x2x4x1xf32> to vector<1xf32>
    %97 = vector.shape_cast %96 : vector<1xf32> to vector<1x1x1x1xf32>
    %98 = vector.extract %97[0, 0, 0, 0] : f32 from vector<1x1x1x1xf32>
    %99 = vector.broadcast %98 : f32 to vector<1x1xf32>
    %100 = arith.addf %93, %99 : vector<1x1xf32>
    %c0_49 = arith.constant 0 : index
    %c0_50 = arith.constant 0 : index
    %101 = vector.load %arg11[%c0_49, %c0_50] : memref<1x1xf32, #tpu.memory_space<vmem>>, vector<1x1xf32>
    tpu.vector_store %arg11[%c0_49, %c0_50], %100 {strides = array<i32>} : memref<1x1xf32, #tpu.memory_space<vmem>>, vector<1x1xf32>,
    %c0_i32_51 = arith.constant 0 : i32
    %102 = arith.cmpi eq, %arg1, %c0_i32_51 : i32
    %103 = arith.extui %102 : i1 to i32
    %c0_i32_52 = arith.constant 0 : i32
    %104 = arith.cmpi ne, %103, %c0_i32_52 : i32
    scf.if %104 {
      %105 = tpu.iota {dimensions = array<i32: 1>} : vector<2x4xi32>
      %c0_i32_53 = arith.constant 0 : i32
      %106 = vector.broadcast %c0_i32_53 : i32 to vector<2x4xi32>
      %107 = arith.cmpi eq, %105, %106 : vector<2x4xi32>
      %c0_54 = arith.constant 0 : index
      %c0_55 = arith.constant 0 : index
      %108 = vector.load %arg6[%c0_54, %c0_55] : memref<2x1xf32, #tpu.memory_space<vmem>>, vector<2x1xf32>
      %cst_56 = arith.constant 0.000000e+00 : f32
      %109 = vector.shape_cast %108 : vector<2x1xf32> to vector<2x1xf32>
      %110 = vector.broadcast %109 : vector<2x1xf32> to vector<2x4xf32>
      %111 = vector.broadcast %cst_56 : f32 to vector<2x4xf32>
      %112 = arith.select %107, %110, %111 : vector<2x4xi1>, vector<2x4xf32>
      %c1_i32 = arith.constant 1 : i32
      %113 = vector.broadcast %c1_i32 : i32 to vector<2x4xi32>
      %114 = arith.cmpi eq, %105, %113 : vector<2x4xi32>
      %c0_57 = arith.constant 0 : index
      %c0_58 = arith.constant 0 : index
      %115 = vector.load %arg7[%c0_57, %c0_58] : memref<2x1xf32, #tpu.memory_space<vmem>>, vector<2x1xf32>
      %cst_59 = arith.constant 0.000000e+00 : f32
      %116 = vector.shape_cast %115 : vector<2x1xf32> to vector<2x1xf32>
      %117 = vector.broadcast %116 : vector<2x1xf32> to vector<2x4xf32>
      %118 = vector.broadcast %cst_59 : f32 to vector<2x4xf32>
      %119 = arith.select %114, %117, %118 : vector<2x4xi1>, vector<2x4xf32>
      %120 = arith.addf %112, %119 : vector<2x4xf32>
      %c2_i32 = arith.constant 2 : i32
      %121 = vector.broadcast %c2_i32 : i32 to vector<2x4xi32>
      %122 = arith.cmpi eq, %105, %121 : vector<2x4xi32>
      %c0_60 = arith.constant 0 : index
      %c0_61 = arith.constant 0 : index
      %123 = vector.load %arg8[%c0_60, %c0_61] : memref<2x1xf32, #tpu.memory_space<vmem>>, vector<2x1xf32>
      %cst_62 = arith.constant 0.000000e+00 : f32
      %124 = vector.shape_cast %123 : vector<2x1xf32> to vector<2x1xf32>
      %125 = vector.broadcast %124 : vector<2x1xf32> to vector<2x4xf32>
      %126 = vector.broadcast %cst_62 : f32 to vector<2x4xf32>
      %127 = arith.select %122, %125, %126 : vector<2x4xi1>, vector<2x4xf32>
      %128 = arith.addf %120, %127 : vector<2x4xf32>
      %c0_63 = arith.constant 0 : index
      %c0_64 = arith.constant 0 : index
      %c0_65 = arith.constant 0 : index
      %129 = vector.load %arg4[%c0_63, %c0_64, %c0_65] : memref<1x2x4xf32, #tpu.memory_space<vmem>>, vector<1x2x4xf32>
      %130 = vector.shape_cast %129 : vector<1x2x4xf32> to vector<2x4xf32>
      %131 = vector.shape_cast %128 : vector<2x4xf32> to vector<1x2x4xf32>
      tpu.vector_store %arg4[%c0_63, %c0_64, %c0_65], %131 {strides = array<i32>} : memref<1x2x4xf32, #tpu.memory_space<vmem>>, vector<1x2x4xf32>,
      %132 = tpu.iota {dimensions = array<i32: 1>} : vector<1x4xi32>
      %c0_i32_66 = arith.constant 0 : i32
      %133 = vector.broadcast %c0_i32_66 : i32 to vector<1x4xi32>
      %134 = arith.cmpi eq, %132, %133 : vector<1x4xi32>
      %c0_67 = arith.constant 0 : index
      %c0_68 = arith.constant 0 : index
      %135 = vector.load %arg9[%c0_67, %c0_68] : memref<1x1xf32, #tpu.memory_space<vmem>>, vector<1x1xf32>
      %cst_69 = arith.constant 0.000000e+00 : f32
      %136 = vector.shape_cast %135 : vector<1x1xf32> to vector<1x1xf32>
      %137 = vector.broadcast %136 : vector<1x1xf32> to vector<1x4xf32>
      %138 = vector.broadcast %cst_69 : f32 to vector<1x4xf32>
      %139 = arith.select %134, %137, %138 : vector<1x4xi1>, vector<1x4xf32>
      %c1_i32_70 = arith.constant 1 : i32
      %140 = vector.broadcast %c1_i32_70 : i32 to vector<1x4xi32>
      %141 = arith.cmpi eq, %132, %140 : vector<1x4xi32>
      %c0_71 = arith.constant 0 : index
      %c0_72 = arith.constant 0 : index
      %142 = vector.load %arg10[%c0_71, %c0_72] : memref<1x1xf32, #tpu.memory_space<vmem>>, vector<1x1xf32>
      %cst_73 = arith.constant 0.000000e+00 : f32
      %143 = vector.shape_cast %142 : vector<1x1xf32> to vector<1x1xf32>
      %144 = vector.broadcast %143 : vector<1x1xf32> to vector<1x4xf32>
      %145 = vector.broadcast %cst_73 : f32 to vector<1x4xf32>
      %146 = arith.select %141, %144, %145 : vector<1x4xi1>, vector<1x4xf32>
      %147 = arith.addf %139, %146 : vector<1x4xf32>
      %c2_i32_74 = arith.constant 2 : i32
      %148 = vector.broadcast %c2_i32_74 : i32 to vector<1x4xi32>
      %149 = arith.cmpi eq, %132, %148 : vector<1x4xi32>
      %c0_75 = arith.constant 0 : index
      %c0_76 = arith.constant 0 : index
      %150 = vector.load %arg11[%c0_75, %c0_76] : memref<1x1xf32, #tpu.memory_space<vmem>>, vector<1x1xf32>
      %cst_77 = arith.constant 0.000000e+00 : f32
      %151 = vector.shape_cast %150 : vector<1x1xf32> to vector<1x1xf32>
      %152 = vector.broadcast %151 : vector<1x1xf32> to vector<1x4xf32>
      %153 = vector.broadcast %cst_77 : f32 to vector<1x4xf32>
      %154 = arith.select %149, %152, %153 : vector<1x4xi1>, vector<1x4xf32>
      %155 = arith.addf %147, %154 : vector<1x4xf32>
      %c0_78 = arith.constant 0 : index
      %c0_79 = arith.constant 0 : index
      %c0_80 = arith.constant 0 : index
      %156 = vector.load %arg5[%c0_78, %c0_79, %c0_80] : memref<1x1x4xf32, #tpu.memory_space<vmem>>, vector<1x1x4xf32>
      %157 = vector.shape_cast %156 : vector<1x1x4xf32> to vector<1x4xf32>
      %158 = vector.shape_cast %155 : vector<1x4xf32> to vector<1x1x4xf32>
      tpu.vector_store %arg5[%c0_78, %c0_79, %c0_80], %158 {strides = array<i32>} : memref<1x1x4xf32, #tpu.memory_space<vmem>>, vector<1x1x4xf32>,
    } else {
    }
    return
  }
  func.func @transform_0(%arg0: i32, %arg1: i32) -> (i32, i32, i32) {
    %c1_i32 = arith.constant 1 : i32
    %0 = arith.muli %arg0, %c1_i32 : i32
    %1 = arith.addi %0, %arg1 : i32
    %c0_i32 = arith.constant 0 : i32
    %c0_i32_0 = arith.constant 0 : i32
    %c0_i32_1 = arith.constant 0 : i32
    return %c0_i32, %1, %c0_i32_0 : i32, i32, i32
  }
  func.func @transform_1(%arg0: i32, %arg1: i32) -> (i32, i32, i32) {
    %c1_i32 = arith.constant 1 : i32
    %0 = arith.muli %arg0, %c1_i32 : i32
    %1 = arith.addi %0, %arg1 : i32
    %c0_i32 = arith.constant 0 : i32
    %c0_i32_0 = arith.constant 0 : i32
    %c0_i32_1 = arith.constant 0 : i32
    return %c0_i32, %1, %c0_i32_0 : i32, i32, i32
  }
  func.func @transform_2(%arg0: i32, %arg1: i32) -> (i32, i32, i32) {
    %c0_i32 = arith.constant 0 : i32
    %c0_i32_0 = arith.constant 0 : i32
    %c0_i32_1 = arith.constant 0 : i32
    return %arg0, %c0_i32, %c0_i32_0 : i32, i32, i32
  }
  func.func @transform_3(%arg0: i32, %arg1: i32) -> (i32, i32, i32) {
    %c0_i32 = arith.constant 0 : i32
    %c0_i32_0 = arith.constant 0 : i32
    %c0_i32_1 = arith.constant 0 : i32
    return %arg0, %c0_i32, %c0_i32_0 : i32, i32, i32
  }
}

</mosaic_0001>

<llo_original>
// kernel: tpu_custom_call.1
$region0: #{tpu_custom_call.1}
  #allocation0 [shape = 'u32[]', space=smem, size = 0x4, offset = 0x4, fixed_abs, tag = 'smem constant byte address 0x4 - core index']
  #allocation1 [shape = 'u32[144,128]{1,0:T(1,128)}', space=vmem, size = 0x12000, scoped, tag = 'internal scratch']
  #allocation2 [shape = 'f32[2,1]{1,0:T(2,128)}', space=vmem, size = 0x400, scoped, tag = 'scratch operand']
  #allocation3 [shape = 'f32[2,1]{1,0:T(2,128)}', space=vmem, size = 0x400, scoped, tag = 'scratch operand']
  #allocation4 [shape = 'f32[2,1]{1,0:T(2,128)}', space=vmem, size = 0x400, scoped, tag = 'scratch operand']
  #allocation5 [shape = 'f32[1,1]{1,0:T(1,128)}', space=vmem, size = 0x200, scoped, tag = 'scratch operand']
  #allocation6 [shape = 'f32[1,1]{1,0:T(1,128)}', space=vmem, size = 0x200, scoped, tag = 'scratch operand']
  #allocation7 [shape = 'f32[1,1]{1,0:T(1,128)}', space=vmem, size = 0x200, scoped, tag = 'scratch operand']
  %s0 = inlined_call_operand.hbm [shape: f32[2,4,256], index: 0, kind: input, shape index: {}]
  %s1 = inlined_call_operand.hbm [shape: f32[2,4,256], index: 1, kind: input, shape index: {}]
  %s2 = inlined_call_operand.hbm [shape: f32[1,2,4], index: 2, kind: output, shape index: {0}]
  %s3 = inlined_call_operand.hbm [shape: f32[1,1,4], index: 3, kind: output, shape index: {1}]
  %4 = xla_tuple %s2, %s3
  %s5 = sld [smem:[#allocation0]]
  $region42: #{tpu_custom_call.1} parent=0
    _
  %s7 = ssub.s32 1, %s5
  %s8 = scalar_select 0, %s7, %s5
  $region1: #{tpu_custom_call.1} parent=0
    #allocation8 [shape = 'u8[8192]{0}', space=vmem, size = 0x2000, scoped, tag = 'input window, operand 0, single buffered']
    #allocation9 [shape = 's32[1]{0}', space=sflag, size = 0x4, scoped, tag = 'scoped memory for tpu_custom_call.1']
    #allocation10 [shape = 's32[1]{0}', space=sflag, size = 0x4, scoped, tag = 'scoped memory for tpu_custom_call.1']
    #allocation11 [shape = 'u8[8192]{0}', space=vmem, size = 0x2000, scoped, tag = 'input window, operand 1, single buffered']
    #allocation12 [shape = 's32[1]{0}', space=sflag, size = 0x4, scoped, tag = 'scoped memory for tpu_custom_call.1']
    #allocation13 [shape = 'u8[1024]{0}', space=vmem, size = 0x400, scoped, tag = 'output window, operand 0, single buffered']
    #allocation14 [shape = 'u8[512]{0}', space=vmem, size = 0x400, scoped, tag = 'output window, operand 1, single buffered']
    #allocation15 [shape = 's32[1]{0}', space=sflag, size = 0x4, scoped, tag = 'scoped memory for tpu_custom_call.1']
    %9 = vsyncpa [#allocation9], 0
    %10 = vsyncpa [#allocation12], 0
    %11 = vsyncpa [#allocation10], 0
    %12 = vsyncpa [#allocation15], 0
    // Predicated region
    $region2: #{tpu_custom_call.1} parent=1 // pred_check
      _
    $region3: #{tpu_custom_call.1} parent=1 // pred_check_branch
      %14 = sbr.rel (0) target = $region5
    $region4: #{tpu_custom_call.1} parent=1 // pred_region
      %s15 = sadd.s32 0, 0
      %s17 = ssub.s32 256, 256
      %18 = vsyncadd [#allocation9], %s17
      %s19 = smul.addr %s15, 2
      %s20 = smul.addr %s19, 64
      %s21 = scalar_lea.hbm %s0, %s20
      %s22 = sshll.u32 [#allocation8], 4
      %s23 = int_to_ptr.vmem [resolvable:$true] %s22
      %28 = dma.hbm_to_vmem [thread:$0]  %s21, 256, %s23, [#allocation9], 128, 128, 8
    $region5: #{tpu_custom_call.1} parent=1 // pred_fallthru
      _
    // Predicated region
    $region6: #{tpu_custom_call.1} parent=1 // pred_check
      _
    $region7: #{tpu_custom_call.1} parent=1 // pred_check_branch
      %30 = sbr.rel (0) target = $region9
    $region8: #{tpu_custom_call.1} parent=1 // pred_region
      %s31 = sadd.s32 0, 0
      %s33 = ssub.s32 256, 256
      %34 = vsyncadd [#allocation12], %s33
      %s35 = smul.addr %s31, 2
      %s36 = smul.addr %s35, 64
      %s37 = scalar_lea.hbm %s1, %s36
      %s38 = sshll.u32 [#allocation11], 4
      %s39 = int_to_ptr.vmem [resolvable:$true] %s38
      %44 = dma.hbm_to_vmem [thread:$0]  %s37, 256, %s39, [#allocation12], 128, 128, 8
    $region9: #{tpu_custom_call.1} parent=1 // pred_fallthru
      _
    // Predicated region
    $region10: #{tpu_custom_call.1} parent=1 // pred_check
      _
    $region11: #{tpu_custom_call.1} parent=1 // pred_check_branch
      %46 = sbr.rel (0) target = $region13
    $region12: #{tpu_custom_call.1} parent=1 // pred_region
      %47 = dma.done [#allocation9], 256
    $region13: #{tpu_custom_call.1} parent=1 // pred_fallthru
      _
    // Predicated region
    $region14: #{tpu_custom_call.1} parent=1 // pred_check
      _
    $region15: #{tpu_custom_call.1} parent=1 // pred_check_branch
      %49 = sbr.rel (0) target = $region17
    $region16: #{tpu_custom_call.1} parent=1 // pred_region
      %50 = dma.done [#allocation12], 256
    $region17: #{tpu_custom_call.1} parent=1 // pred_fallthru
      _
    %s51 = sadd.s32 0, 0
    %s52 = sadd.s32 0, 0
    %p53 = scmp.eq.s32.totalorder 0, 0
    // Predicated region
    $region18: #{tpu_custom_call.1} parent=1 // pred_check
      %p54 = pneg %p53
    $region19: #{tpu_custom_call.1} parent=1 // pred_check_branch
      %56 = sbr.rel (%p54) target = $region21
    $region20: #{tpu_custom_call.1} parent=1 // pred_region
      %vm57 = vcmask 1024
      %58 = vst.msk [vmem:[#allocation2] sm:$0x3] %vm57, 0.0
      %59 = vst.msk [vmem:[#allocation3] sm:$0x3] %vm57, 0.0
      %60 = vst.msk [vmem:[#allocation4] sm:$0x3] %vm57, 0.0
      %vm61 = vcmask 0
      %62 = vst.msk [vmem:[#allocation5] sm:$0x1] %vm61, 0.0
      %63 = vst.msk [vmem:[#allocation6] sm:$0x1] %vm61, 0.0
      %64 = vst.msk [vmem:[#allocation7] sm:$0x1] %vm61, 0.0
    $region21: #{tpu_custom_call.1} parent=1 // pred_fallthru
      _
    %v65 = vld [vmem:[#allocation8] sm:$0xff]
    %v66 = vld [vmem:[#allocation8 + $0x8] sm:$0xff]
    %v67 = vld [vmem:[#allocation11] sm:$0xff]
    %v68 = vld [vmem:[#allocation11 + $0x8] sm:$0xff]
    %v69 = vmul.f32 %v65, %v67
    %v70 = vmul.f32 %v66, %v68
    %v73 = vcombine.high %v69, %v69
    %v74 = vcombine.high %v70, %v70
    %vm77 = vcmask 1043456
    %v78 = vsel %vm77, %v69, 0.0
    %v79 = vsel %vm77, %v73, 0.0
    %v80 = vadd.f32 %v78, %v79
    %81 = vadd.xlane.f32.xlu0 %v80
    %v82 = vpop.xlane.xlu0 %81
    %v83 = vsel %vm77, %v70, 0.0
    %v84 = vsel %vm77, %v74, 0.0
    %v85 = vadd.f32 %v83, %v84
    %86 = vadd.xlane.f32.xlu0 %v85
    %v87 = vpop.xlane.xlu0 %86
    %v88 = vmul.f32 %v65, %v65
    %v89 = vmul.f32 %v66, %v66
    %v92 = vcombine.high %v88, %v88
    %v93 = vcombine.high %v89, %v89
    %v96 = vsel %vm77, %v88, 0.0
    %v97 = vsel %vm77, %v92, 0.0
    %v98 = vadd.f32 %v96, %v97
    %99 = vadd.xlane.f32.xlu0 %v98
    %v100 = vpop.xlane.xlu0 %99
    %v101 = vsel %vm77, %v89, 0.0
    %v102 = vsel %vm77, %v93, 0.0
    %v103 = vadd.f32 %v101, %v102
    %104 = vadd.xlane.f32.xlu0 %v103
    %v105 = vpop.xlane.xlu0 %104
    %v106 = vmul.f32 %v67, %v67
    %v107 = vmul.f32 %v68, %v68
    %v110 = vcombine.high %v106, %v106
    %v111 = vcombine.high %v107, %v107
    %v114 = vsel %vm77, %v106, 0.0
    %v115 = vsel %vm77, %v110, 0.0
    %v116 = vadd.f32 %v114, %v115
    %117 = vadd.xlane.f32.xlu0 %v116
    %v118 = vpop.xlane.xlu0 %117
    %v119 = vsel %vm77, %v107, 0.0
    %v120 = vsel %vm77, %v111, 0.0
    %v121 = vadd.f32 %v119, %v120
    %122 = vadd.xlane.f32.xlu0 %v121
    %v123 = vpop.xlane.xlu0 %122
    %v126 = vcombine.high %v65, %v65
    %v127 = vcombine.high %v66, %v66
    %v130 = vsel %vm77, %v65, 0.0
    %v131 = vsel %vm77, %v126, 0.0
    %v132 = vadd.f32 %v130, %v131
    %133 = vadd.xlane.f32.xlu0 %v132
    %v134 = vpop.xlane.xlu0 %133
    %v135 = vsel %vm77, %v66, 0.0
    %v136 = vsel %vm77, %v127, 0.0
    %v137 = vadd.f32 %v135, %v136
    %138 = vadd.xlane.f32.xlu0 %v137
    %v139 = vpop.xlane.xlu0 %138
    %v140 = vmul.f32 %v134, 0.00390625
    %v141 = vmul.f32 %v139, 0.00390625
    %v144 = vcombine.high %v67, %v67
    %v145 = vcombine.high %v68, %v68
    %v148 = vsel %vm77, %v67, 0.0
    %v149 = vsel %vm77, %v144, 0.0
    %v150 = vadd.f32 %v148, %v149
    %151 = vadd.xlane.f32.xlu0 %v150
    %v152 = vpop.xlane.xlu0 %151
    %v153 = vsel %vm77, %v68, 0.0
    %v154 = vsel %vm77, %v145, 0.0
    %v155 = vadd.f32 %v153, %v154
    %156 = vadd.xlane.f32.xlu0 %v155
    %v157 = vpop.xlane.xlu0 %156
    %v158 = vmul.f32 %v152, 0.00390625
    %v159 = vmul.f32 %v157, 0.00390625
    %v160 = vld [vmem:[#allocation2] sm:$0x3]
    %v163 = vlaneseq
    %v164 = vand.u32 %v163, 127
    %v165 = vlaneseq
    %v166 = vshrl.u32 %v165, 7
    %v167 = vsub.s32 %v164, %v166
    %v168 = vrot.slane %v82, %v167
    %v169 = vlaneseq
    %v170 = vshrl.u32 %v169, 7
    %v171 = vsub.s32 %v164, %v170
    %v172 = vrot.slane %v87, %v171
    %vm173 = vcmask 1041409
    %v174 = vsel %vm173, %v172, %v168
    %vm176 = vcmask 25600
    %v177 = vsel %vm176, %v174, 0.0
    %178 = vadd.xlane.f32.xlu0 %v177
    %v179 = vpop.xlane.xlu0 %178
    %v180 = vadd.f32 %v160, %v179
    %vm181 = vcmask 1024
    %182 = vst.msk [vmem:[#allocation2] sm:$0x3] %vm181, %v180
    %v183 = vld [vmem:[#allocation3] sm:$0x3]
    %v186 = vlaneseq
    %v187 = vshrl.u32 %v186, 7
    %v188 = vsub.s32 %v164, %v187
    %v189 = vrot.slane %v100, %v188
    %v190 = vlaneseq
    %v191 = vshrl.u32 %v190, 7
    %v192 = vsub.s32 %v164, %v191
    %v193 = vrot.slane %v105, %v192
    %v194 = vsel %vm173, %v193, %v189
    %v196 = vsel %vm176, %v194, 0.0
    %197 = vadd.xlane.f32.xlu0 %v196
    %v198 = vpop.xlane.xlu0 %197
    %v199 = vadd.f32 %v183, %v198
    %200 = vst.msk [vmem:[#allocation3] sm:$0x3] %vm181, %v199
    %v201 = vld [vmem:[#allocation4] sm:$0x3]
    %v204 = vlaneseq
    %v205 = vshrl.u32 %v204, 7
    %v206 = vsub.s32 %v164, %v205
    %v207 = vrot.slane %v118, %v206
    %v208 = vlaneseq
    %v209 = vshrl.u32 %v208, 7
    %v210 = vsub.s32 %v164, %v209
    %v211 = vrot.slane %v123, %v210
    %v212 = vsel %vm173, %v211, %v207
    %v214 = vsel %vm176, %v212, 0.0
    %215 = vadd.xlane.f32.xlu0 %v214
    %v216 = vpop.xlane.xlu0 %215
    %v217 = vadd.f32 %v201, %v216
    %218 = vst.msk [vmem:[#allocation4] sm:$0x3] %vm181, %v217
    %v219 = vsel %vm77, %v65, -inf
    %v220 = vsel %vm77, %v126, -inf
    %v221 = vmax.f32 %v219, %v220
    %222 = vmax.xlane.f32.xlu0 %v221
    %v223 = vpop.xlane.xlu0 %222
    %v224 = vsel %vm77, %v66, -inf
    %v225 = vsel %vm77, %v127, -inf
    %v226 = vmax.f32 %v224, %v225
    %227 = vmax.xlane.f32.xlu0 %v226
    %v228 = vpop.xlane.xlu0 %227
    %v229 = vsel %vm77, %v67, -inf
    %v230 = vsel %vm77, %v144, -inf
    %v231 = vmax.f32 %v229, %v230
    %232 = vmax.xlane.f32.xlu0 %v231
    %v233 = vpop.xlane.xlu0 %232
    %v234 = vsel %vm77, %v68, -inf
    %v235 = vsel %vm77, %v145, -inf
    %v236 = vmax.f32 %v234, %v235
    %237 = vmax.xlane.f32.xlu0 %v236
    %v238 = vpop.xlane.xlu0 %237
    %v242 = vunpack.c.l.s4 839922192
    %v243 = vunpack.c.0.s8 %v242
    %v244 = vlaneseq
    %v245 = vshrl.u32 %v244, 7
    %v246 = vsub.s32 %v243, %v245
    %v247 = vrot.slane %v223, %v246
    %v249 = vunpack.c.l.s4 839922192
    %v250 = vunpack.c.0.s8 %v249
    %v251 = vlaneseq
    %v252 = vshrl.u32 %v251, 7
    %v253 = vsub.s32 %v250, %v252
    %v254 = vrot.slane %v228, %v253
    %v257 = vsub.f32 %v65, %v247
    %v258 = vsub.f32 %v66, %v254
    %v259 = vmul.f32 %v257, 1.442695
    %v260 = vpow.pop %v259
    %v261 = vmul.f32 %v258, 1.442695
    %v262 = vpow.pop %v261
    %v266 = vunpack.c.l.s4 839922192
    %v267 = vunpack.c.0.s8 %v266
    %v268 = vlaneseq
    %v269 = vshrl.u32 %v268, 7
    %v270 = vsub.s32 %v267, %v269
    %v271 = vrot.slane %v233, %v270
    %v273 = vunpack.c.l.s4 839922192
    %v274 = vunpack.c.0.s8 %v273
    %v275 = vlaneseq
    %v276 = vshrl.u32 %v275, 7
    %v277 = vsub.s32 %v274, %v276
    %v278 = vrot.slane %v238, %v277
    %v281 = vsub.f32 %v67, %v271
    %v282 = vsub.f32 %v68, %v278
    %v283 = vmul.f32 %v281, 1.442695
    %v284 = vpow.pop %v283
    %v285 = vmul.f32 %v282, 1.442695
    %v286 = vpow.pop %v285
    %v289 = vcombine.high %v260, %v260
    %v290 = vcombine.high %v262, %v262
    %v293 = vsel %vm77, %v260, 0.0
    %v294 = vsel %vm77, %v289, 0.0
    %v295 = vadd.f32 %v293, %v294
    %296 = vadd.xlane.f32.xlu0 %v295
    %v297 = vpop.xlane.xlu0 %296
    %v298 = vsel %vm77, %v262, 0.0
    %v299 = vsel %vm77, %v290, 0.0
    %v300 = vadd.f32 %v298, %v299
    %301 = vadd.xlane.f32.xlu0 %v300
    %v302 = vpop.xlane.xlu0 %301
    %v305 = vcombine.high %v284, %v284
    %v306 = vcombine.high %v286, %v286
    %v309 = vsel %vm77, %v284, 0.0
    %v310 = vsel %vm77, %v305, 0.0
    %v311 = vadd.f32 %v309, %v310
    %312 = vadd.xlane.f32.xlu0 %v311
    %v313 = vpop.xlane.xlu0 %312
    %v314 = vsel %vm77, %v286, 0.0
    %v315 = vsel %vm77, %v306, 0.0
    %v316 = vadd.f32 %v314, %v315
    %317 = vadd.xlane.f32.xlu0 %v316
    %v318 = vpop.xlane.xlu0 %317
    %v319 = vsub.f32 %v223, %v233
    %v320 = vsub.f32 %v228, %v238
    %v321 = vlog2.pop %v297
    %v322 = vmul.f32 %v321, 0.6931472
    %v323 = vlog2.pop %v302
    %v324 = vmul.f32 %v323, 0.6931472
    %v325 = vlog2.pop %v313
    %v326 = vmul.f32 %v325, 0.6931472
    %v327 = vlog2.pop %v318
    %v328 = vmul.f32 %v327, 0.6931472
    %v329 = vsub.f32 %v322, %v326
    %v330 = vsub.f32 %v324, %v328
    %v331 = vadd.f32 %v319, %v329
    %v332 = vadd.f32 %v320, %v330
    %v333 = vsub.f32 %v65, %v67
    %v334 = vsub.f32 %v66, %v68
    %v335 = vmul.f32 %v260, %v333
    %v336 = vmul.f32 %v262, %v334
    %v339 = vcombine.high %v335, %v335
    %v340 = vcombine.high %v336, %v336
    %v343 = vsel %vm77, %v335, 0.0
    %v344 = vsel %vm77, %v339, 0.0
    %v345 = vadd.f32 %v343, %v344
    %346 = vadd.xlane.f32.xlu0 %v345
    %v347 = vpop.xlane.xlu0 %346
    %v348 = vsel %vm77, %v336, 0.0
    %v349 = vsel %vm77, %v340, 0.0
    %v350 = vadd.f32 %v348, %v349
    %351 = vadd.xlane.f32.xlu0 %v350
    %v352 = vpop.xlane.xlu0 %351
    %v353 = vrcp.pop %v297
    %v354 = vrcp.pop %v302
    %v355 = vmul.f32 %v347, %v353
    %v356 = vmul.f32 %v352, %v354
    %v357 = vsub.f32 %v355, %v331
    %v358 = vsub.f32 %v356, %v332
    %v359 = vld [vmem:[#allocation5] sm:$0x1]
    %vm360 = vcmask 3072
    %v361 = vsel %vm360, %v357, 0.0
    %v362 = vsel %vm360, %v358, 0.0
    %v363 = vadd.f32 %v361, %v362
    %364 = vadd.xlane.f32.xlu0 %v363
    %v365 = vpop.xlane.xlu0 %364
    %v366 = vrot.slane %v365, 4
    %v367 = vadd.f32 %v365, %v366
    %v368 = vrot.slane %v367, 2
    %v369 = vadd.f32 %v367, %v368
    %v370 = vrot.slane %v369, 1
    %v371 = vadd.f32 %v369, %v370
    %s372 = vtos %v371
    %v373 = vstv %s372
    %v374 = vadd.f32 %v359, %v373
    %vm375 = vcmask 0
    %376 = vst.msk [vmem:[#allocation5] sm:$0x1] %vm375, %v374
    %v380 = vunpack.c.l.s4 839922192
    %v381 = vunpack.c.0.s8 %v380
    %v382 = vlaneseq
    %v383 = vshrl.u32 %v382, 7
    %v384 = vsub.s32 %v381, %v383
    %v385 = vrot.slane %v140, %v384
    %v387 = vunpack.c.l.s4 839922192
    %v388 = vunpack.c.0.s8 %v387
    %v389 = vlaneseq
    %v390 = vshrl.u32 %v389, 7
    %v391 = vsub.s32 %v388, %v390
    %v392 = vrot.slane %v141, %v391
    %v395 = vsub.f32 %v65, %v385
    %v396 = vsub.f32 %v66, %v392
    %v397 = vmul.f32 %v395, %v395
    %v398 = vmul.f32 %v396, %v396
    %v401 = vcombine.high %v397, %v397
    %v402 = vcombine.high %v398, %v398
    %v405 = vsel %vm77, %v397, 0.0
    %v406 = vsel %vm77, %v401, 0.0
    %v407 = vadd.f32 %v405, %v406
    %408 = vadd.xlane.f32.xlu0 %v407
    %v409 = vpop.xlane.xlu0 %408
    %v410 = vsel %vm77, %v398, 0.0
    %v411 = vsel %vm77, %v402, 0.0
    %v412 = vadd.f32 %v410, %v411
    %413 = vadd.xlane.f32.xlu0 %v412
    %v414 = vpop.xlane.xlu0 %413
    %v415 = vmul.f32 %v409, 0.00390625
    %v416 = vmul.f32 %v414, 0.00390625
    %v420 = vunpack.c.l.s4 839922192
    %v421 = vunpack.c.0.s8 %v420
    %v422 = vlaneseq
    %v423 = vshrl.u32 %v422, 7
    %v424 = vsub.s32 %v421, %v423
    %v425 = vrot.slane %v158, %v424
    %v427 = vunpack.c.l.s4 839922192
    %v428 = vunpack.c.0.s8 %v427
    %v429 = vlaneseq
    %v430 = vshrl.u32 %v429, 7
    %v431 = vsub.s32 %v428, %v430
    %v432 = vrot.slane %v159, %v431
    %v435 = vsub.f32 %v67, %v425
    %v436 = vsub.f32 %v68, %v432
    %v437 = vmul.f32 %v435, %v435
    %v438 = vmul.f32 %v436, %v436
    %v441 = vcombine.high %v437, %v437
    %v442 = vcombine.high %v438, %v438
    %v445 = vsel %vm77, %v437, 0.0
    %v446 = vsel %vm77, %v441, 0.0
    %v447 = vadd.f32 %v445, %v446
    %448 = vadd.xlane.f32.xlu0 %v447
    %v449 = vpop.xlane.xlu0 %448
    %v450 = vsel %vm77, %v438, 0.0
    %v451 = vsel %vm77, %v442, 0.0
    %v452 = vadd.f32 %v450, %v451
    %453 = vadd.xlane.f32.xlu0 %v452
    %v454 = vpop.xlane.xlu0 %453
    %v455 = vmul.f32 %v449, 0.00390625
    %v456 = vmul.f32 %v454, 0.00390625
    %v457 = vsub.f32 %v140, %v158
    %v458 = vsub.f32 %v141, %v159
    %v459 = vsub.f32 %v415, %v455
    %v460 = vsub.f32 %v416, %v456
    %v461 = vld [vmem:[#allocation6] sm:$0x1]
    %v462 = vmul.f32 %v457, %v457
    %v463 = vmul.f32 %v458, %v458
    %v464 = vsel %vm360, %v462, 0.0
    %v465 = vsel %vm360, %v463, 0.0
    %v466 = vadd.f32 %v464, %v465
    %467 = vadd.xlane.f32.xlu0 %v466
    %v468 = vpop.xlane.xlu0 %467
    %v469 = vrot.slane %v468, 4
    %v470 = vadd.f32 %v468, %v469
    %v471 = vrot.slane %v470, 2
    %v472 = vadd.f32 %v470, %v471
    %v473 = vrot.slane %v472, 1
    %v474 = vadd.f32 %v472, %v473
    %s475 = vtos %v474
    %v476 = vstv %s475
    %v477 = vadd.f32 %v461, %v476
    %478 = vst.msk [vmem:[#allocation6] sm:$0x1] %vm375, %v477
    %v479 = vld [vmem:[#allocation7] sm:$0x1]
    %v480 = vmul.f32 %v459, %v459
    %v481 = vmul.f32 %v460, %v460
    %v482 = vsel %vm360, %v480, 0.0
    %v483 = vsel %vm360, %v481, 0.0
    %v484 = vadd.f32 %v482, %v483
    %485 = vadd.xlane.f32.xlu0 %v484
    %v486 = vpop.xlane.xlu0 %485
    %v487 = vrot.slane %v486, 4
    %v488 = vadd.f32 %v486, %v487
    %v489 = vrot.slane %v488, 2
    %v490 = vadd.f32 %v488, %v489
    %v491 = vrot.slane %v490, 1
    %v492 = vadd.f32 %v490, %v491
    %s493 = vtos %v492
    %v494 = vstv %s493
    %v495 = vadd.f32 %v479, %v494
    %496 = vst.msk [vmem:[#allocation7] sm:$0x1] %vm375, %v495
    // Predicated region
    $region22: #{tpu_custom_call.1} parent=1 // pred_check
      %p497 = pneg %p53
    $region23: #{tpu_custom_call.1} parent=1 // pred_check_branch
      %499 = sbr.rel (%p497) target = $region25
    $region24: #{tpu_custom_call.1} parent=1 // pred_region
      %vm500 = vcmp.eq.s32.totalorder %v164, 0
      %v501 = vld [vmem:[#allocation2] sm:$0x3]
      %503 = vset.pattern.permute.xlu0 0
      %504 = vperm.xlu0 %503, %v501
      %v505 = vpop.permute.xlu0 %504
      %v507 = vsel %vm500, %v505, 0.0
      %vm508 = vcmp.eq.s32.totalorder %v164, 1
      %v509 = vld [vmem:[#allocation3] sm:$0x3]
      %511 = vset.pattern.permute.xlu0 0
      %512 = vperm.xlu0 %511, %v509
      %v513 = vpop.permute.xlu0 %512
      %v515 = vsel %vm508, %v513, 0.0
      %v516 = vadd.f32 %v507, %v515
      %vm517 = vcmp.eq.s32.totalorder %v164, 2
      %v518 = vld [vmem:[#allocation4] sm:$0x3]
      %520 = vset.pattern.permute.xlu0 0
      %521 = vperm.xlu0 %520, %v518
      %v522 = vpop.permute.xlu0 %521
      %v524 = vsel %vm517, %v522, 0.0
      %v525 = vadd.f32 %v516, %v524
      %526 = vst.msk [vmem:[#allocation13] sm:$0x3] %vm176, %v525
      %v527 = vld [vmem:[#allocation5] sm:$0x1]
      %529 = vset.pattern.permute.xlu0 0
      %530 = vperm.xlu0 %529, %v527
      %v531 = vpop.permute.xlu0 %530
      %v533 = vlaneseq
      %v534 = vshrl.u32 %v533, 7
      %v535 = vsub.s32 0, %v534
      %v536 = vrot.slane %v531, %v535
      %v537 = vsel %vm500, %v536, 0.0
      %v538 = vld [vmem:[#allocation6] sm:$0x1]
      %540 = vset.pattern.permute.xlu0 0
      %541 = vperm.xlu0 %540, %v538
      %v542 = vpop.permute.xlu0 %541
      %v544 = vlaneseq
      %v545 = vshrl.u32 %v544, 7
      %v546 = vsub.s32 0, %v545
      %v547 = vrot.slane %v542, %v546
      %v548 = vsel %vm508, %v547, 0.0
      %v549 = vadd.f32 %v537, %v548
      %v550 = vld [vmem:[#allocation7] sm:$0x1]
      %552 = vset.pattern.permute.xlu0 0
      %553 = vperm.xlu0 %552, %v550
      %v554 = vpop.permute.xlu0 %553
      %v556 = vlaneseq
      %v557 = vshrl.u32 %v556, 7
      %v558 = vsub.s32 0, %v557
      %v559 = vrot.slane %v554, %v558
      %v560 = vsel %vm517, %v559, 0.0
      %v561 = vadd.f32 %v549, %v560
      %vm562 = vcmask 24576
      %563 = vst.msk [vmem:[#allocation14] sm:$0x1] %vm562, %v561
    $region25: #{tpu_custom_call.1} parent=1 // pred_fallthru
      _
    // Predicated region
    $region26: #{tpu_custom_call.1} parent=1 // pred_check
      _
    $region27: #{tpu_custom_call.1} parent=1 // pred_check_branch
      %565 = sbr.rel (0) target = $region29
    $region28: #{tpu_custom_call.1} parent=1 // pred_region
      %s567 = ssub.s32 32, 32
      %568 = vsyncadd [#allocation10], %s567
      %s570 = sshll.u32 [#allocation13], 4
      %s571 = int_to_ptr.vmem [resolvable:$true] %s570
      %573 = dma.vmem_to_hbm [thread:$0]  %s571, 32, %s2, [#allocation10]
    $region29: #{tpu_custom_call.1} parent=1 // pred_fallthru
      _
    // Predicated region
    $region30: #{tpu_custom_call.1} parent=1 // pred_check
      _
    $region31: #{tpu_custom_call.1} parent=1 // pred_check_branch
      %575 = sbr.rel (0) target = $region33
    $region32: #{tpu_custom_call.1} parent=1 // pred_region
      %s577 = ssub.s32 16, 16
      %578 = vsyncadd [#allocation15], %s577
      %s580 = sshll.u32 [#allocation14], 4
      %s581 = int_to_ptr.vmem [resolvable:$true] %s580
      %583 = dma.vmem_to_hbm [thread:$0]  %s581, 16, %s3, [#allocation15]
    $region33: #{tpu_custom_call.1} parent=1 // pred_fallthru
      _
    // Predicated region
    $region34: #{tpu_custom_call.1} parent=1 // pred_check
      _
    $region35: #{tpu_custom_call.1} parent=1 // pred_check_branch
      %585 = sbr.rel (0) target = $region37
    $region36: #{tpu_custom_call.1} parent=1 // pred_region
      %586 = dma.done [#allocation10], 32
    $region37: #{tpu_custom_call.1} parent=1 // pred_fallthru
      _
    // Predicated region
    $region38: #{tpu_custom_call.1} parent=1 // pred_check
      _
    $region39: #{tpu_custom_call.1} parent=1 // pred_check_branch
      %588 = sbr.rel (0) target = $region41
    $region40: #{tpu_custom_call.1} parent=1 // pred_region
      %589 = dma.done [#allocation15], 16
    $region41: #{tpu_custom_call.1} parent=1 // pred_fallthru
      _
    %590 = vsyncpa [#allocation9], 1
    %591 = vsyncpa [#allocation12], 1
    %592 = vsyncpa [#allocation10], 1
    %593 = vsyncpa [#allocation15], 1

</llo_original>
